<compile_context>
chip_gen: v6e
topology: v6e:2x2x1
jax: 0.10.0
libtpu: 0.0.40
codegen_flags: <defaults>
</compile_context>

<pallas_src>
import functools

import jax
import jax.numpy as jnp
from jax import lax
from jax.experimental import pallas as pl
from jax.experimental.pallas import tpu as pltpu

_LANES = 128
_SUBLANES = 8


def _round_up(n, m):
    return ((n + m - 1) // m) * m


def _tpu_block_params():
    """(target x-block bytes, vmem_limit_bytes) per TPU generation."""
    try:
        vmem_cap = pltpu.get_tpu_info().vmem_capacity_bytes
    except Exception:
        vmem_cap = 64 * 1024 * 1024
    if vmem_cap >= 96 * 1024 * 1024:          # v5e / v6e: 128 MiB VMEM
        return 8 * 1024 * 1024, 64 * 1024 * 1024
    # v7x (64 MiB physical VMEM) or unknown: stay inside a 32 MiB scope.
    return 6 * 1024 * 1024, 32 * 1024 * 1024


def _make_kernel(*, r_tile, k_tile, hw, n_k, ragged, acc_parts):
    n_chunks = k_tile // _LANES
    tail_w = k_tile - n_chunks * _LANES       # >0 only when k_tile == hw (one k step)

    def kernel(x_ref, e_ref, o_ref, acc_ref):
        # x_ref: (r_tile, k_tile)   e_ref: (1, k_tile)
        # o_ref: (1, r_tile, 1)     acc_ref: (r_tile, 128) f32, resident over k
        k = pl.program_id(2)

        @pl.when(k == 0)
        def _():
            acc_ref[...] = jnp.zeros_like(acc_ref)

        if ragged:
            col0 = (pl.program_id(0) * n_k + k) * k_tile      # global column of block
            lane = lax.broadcasted_iota(jnp.int32, (1, _LANES), 1)

        def chunk(j):
            col = j * _LANES
            if not isinstance(col, int):
                col = pl.multiple_of(col, _LANES)
            xc = x_ref[:, pl.ds(col, _LANES)].astype(jnp.float32)   # (r_tile,128)
            ec = e_ref[:, pl.ds(col, _LANES)].astype(jnp.float32)   # (1,128)
            p = xc * ec
            if ragged:
                p = jnp.where(col0 + col + lane < hw, p, 0.0)       # mask OOB lanes
            return p

        if n_chunks > 0:
            npart = acc_parts
            n_groups = n_chunks // npart
            rem = n_chunks - n_groups * npart
            parts = tuple(jnp.zeros((r_tile, _LANES), jnp.float32)
                          for _ in range(npart))
            if n_groups > 0:
                def body(g, carry):
                    base = g * npart
                    return tuple(carry[i] + chunk(base + i) for i in range(npart))
                parts = lax.fori_loop(0, n_groups, body, parts)
            if rem:
                parts = list(parts)
                for i in range(rem):
                    parts[i] = parts[i] + chunk(n_groups * npart + i)
            acc_ref[...] += functools.reduce(lambda a, b: a + b, parts)

        if tail_w:
            # Static sub-128 tail of a full-extent block (single k step).
            xt = x_ref[:, n_chunks * _LANES:k_tile].astype(jnp.float32)
            et = e_ref[:, n_chunks * _LANES:k_tile].astype(jnp.float32)
            tail_sum = jnp.sum(xt * et, axis=-1, keepdims=True)     # (r_tile,1)

        @pl.when(k == pl.num_programs(2) - 1)
        def _():
            sums = jnp.sum(acc_ref[...], axis=-1, keepdims=True)    # (r_tile,1)
            if tail_w:
                sums = sums + tail_sum
            o_ref[...] = sums[None].astype(o_ref.dtype)

    return kernel


def masked_explanation_sum(x, explanation):
    """Pallas equivalent of MaskedExplanationSum.forward.

    x:           (B, C, H, W)
    explanation: (H, W)
    returns:     (B,)
    """
    B, C, H, W = x.shape
    assert explanation.shape == (H, W)
    HW = H * W
    R = B * C

    x2 = x.reshape(R, HW)                      # free for contiguous NCHW
    e2 = explanation.reshape(1, HW)

    target_bytes, vmem_limit = _tpu_block_params()
    itemsize = jnp.dtype(x2.dtype).itemsize

    # Row (sublane) tiling: B and C fold together -> dense vregs, >=2 row
    # blocks whenever R >= 9 (keeps both v7x cores busy for large inputs).
    if R <= _SUBLANES:
        r_tile = R
    else:
        r_tile = min(64, _round_up(pl.cdiv(R, 2), _SUBLANES))
    n_rb = pl.cdiv(R, r_tile)

    # K (lane) tiling: sized by the HBM byte budget, multiple of 128 lanes.
    k_cap = max(_LANES, (target_bytes // (r_tile * itemsize)) // _LANES * _LANES)
    if HW <= k_cap:
        k_tile = HW                            # full-extent block (always legal)
    else:
        k_tile = k_cap                         # multiple of 128
    n_k_total = pl.cdiv(HW, k_tile)

    # If the row axis has a single block, split the reduction axis into two
    # parallel grid blocks (per-core partial sums, combined in the wrapper).
    if n_rb == 1 and n_k_total == 1 and HW >= 2 * _LANES:
        k_tile = _round_up(pl.cdiv(HW, 2), _LANES)
        n_k_total = pl.cdiv(HW, k_tile)
    n_split = 2 if (n_rb == 1 and n_k_total >= 2 and n_k_total % 2 == 0) else 1
    n_k = n_k_total // n_split

    ragged = (n_k_total * k_tile != HW)        # grid covers columns >= HW
    if k_tile % _LANES != 0:                   # static tail path: single k step
        assert n_split == 1 and n_k == 1

    acc_parts = max(1, min(8, 128 // max(1, r_tile), max(1, k_tile // _LANES)))

    kernel = _make_kernel(r_tile=r_tile, k_tile=k_tile, hw=HW, n_k=n_k,
                          ragged=ragged, acc_parts=acc_parts)

    out = pl.pallas_call(
        kernel,
        out_shape=jax.ShapeDtypeStruct((n_split, R, 1), jnp.float32),
        grid_spec=pltpu.PrefetchScalarGridSpec(
            num_scalar_prefetch=0,
            grid=(n_split, n_rb, n_k),
            in_specs=[
                pl.BlockSpec((r_tile, k_tile), lambda s, b, k: (b, s * n_k + k)),
                pl.BlockSpec((1, k_tile), lambda s, b, k: (0, s * n_k + k)),
            ],
            out_specs=pl.BlockSpec((1, r_tile, 1), lambda s, b, k: (s, b, 0)),
            scratch_shapes=[pltpu.VMEM((r_tile, _LANES), jnp.float32)],
        ),
        compiler_params=pltpu.CompilerParams(
            dimension_semantics=("parallel", "parallel", "arbitrary"),
            vmem_limit_bytes=vmem_limit,
        ),
        cost_estimate=pl.CostEstimate(
            flops=2 * R * HW,
            transcendentals=0,
            bytes_accessed=(R * HW * itemsize
                            + n_split * n_rb * n_k * k_tile * itemsize
                            + n_split * R * 4),
        ),
    )(x2, e2)

    # Combine per-core splits and the folded channel axis (tiny XLA reduce).
    y = out.reshape(n_split, B, C).sum(axis=(0, 2))
    return y.astype(x.dtype)


if __name__ == "__main__":
    key = jax.random.PRNGKey(0)

    def _reference(x, e):
        return jnp.sum((x * e[None, None, :, :]).reshape(x.shape[0], -1), axis=1)

    def _check(B, C, H, W, tag):
        kx, ke = jax.random.split(jax.random.fold_in(key, tag))
        x = jax.random.normal(kx, (B, C, H, W), dtype=jnp.float32)
        # Deterministic non-trivial "initial_value" (default zeros is trivial).
        e = jax.random.normal(ke, (H, W), dtype=jnp.float32)
        y = jax.block_until_ready(masked_explanation_sum(x, e))
        y_ref = _reference(x, e)
        assert y.shape == (B,)
        assert jnp.allclose(y, y_ref, rtol=1e-4, atol=5e-3), (y, y_ref)

    # Primary small example consistent with the module (B=2, C=4, 16x16).
    _check(2, 4, 16, 16, 0)
    # Extra coverage: ragged H*W + reduction split across parallel blocks.
    _check(1, 2, 20, 20, 1)
    # Extra coverage: sub-128 spatial dim + partial row blocks (B*C = 15).
    _check(3, 5, 6, 17, 2)

    print("KERNEL_OK")
</pallas_src>

<mosaic_0001>
module attributes {stable_mosaic.version = 11 : i64} {
  func.func @kernel(%arg0: i32, %arg1: i32, %arg2: i32, %arg3: memref<8x128xf32, #tpu.memory_space<vmem>>, %arg4: memref<1x128xf32, #tpu.memory_space<vmem>>, %arg5: memref<1x8x1xf32, #tpu.memory_space<vmem>>, %arg6: memref<8x128xf32, #tpu.memory_space<vmem>>) attributes {dimension_semantics = [#tpu.dimension_semantics<parallel>, #tpu.dimension_semantics<parallel>, #tpu.dimension_semantics<arbitrary>], iteration_bounds = array<i64: 2, 1, 1>, scalar_prefetch = 0 : i64, scratch_operands = 1 : i64, tpu.core_type = #tpu.core_type<tc>, window_params = [{transform_indices = @transform_0, window_bounds = array<i64: 8, 128>}, {transform_indices = @transform_1, window_bounds = array<i64: 1, 128>}, {transform_indices = @transform_2, window_bounds = array<i64: 1, 8, 1>}]} {
    %c0_i32 = arith.constant 0 : i32
    %0 = arith.cmpi eq, %arg2, %c0_i32 : i32
    %1 = arith.extui %0 : i1 to i32
    %c0_i32_0 = arith.constant 0 : i32
    %2 = arith.cmpi ne, %1, %c0_i32_0 : i32
    scf.if %2 {
      %cst_11 = arith.constant 0.000000e+00 : f32
      %21 = vector.broadcast %cst_11 : f32 to vector<8x128xf32>
      %c0_12 = arith.constant 0 : index
      %c0_13 = arith.constant 0 : index
      %22 = vector.load %arg6[%c0_12, %c0_13] : memref<8x128xf32, #tpu.memory_space<vmem>>, vector<8x128xf32>
      tpu.vector_store %arg6[%c0_12, %c0_13], %21 {strides = array<i32>} : memref<8x128xf32, #tpu.memory_space<vmem>>, vector<8x128xf32>,
    } else {
    }
    %cst = arith.constant 0.000000e+00 : f32
    %3 = vector.broadcast %cst : f32 to vector<8x128xf32>
    %c0_i32_1 = arith.constant 0 : i32
    %c1_i32 = arith.constant 1 : i32
    %4 = arith.muli %c0_i32_1, %c1_i32 : i32
    %c0_i32_2 = arith.constant 0 : i32
    %5 = arith.addi %4, %c0_i32_2 : i32
    %c128_i32 = arith.constant 128 : i32
    %6 = arith.muli %5, %c128_i32 : i32
    %7 = tpu.assume_multiple %6, 128 : i32
    %c0 = arith.constant 0 : index
    %8 = arith.index_cast %7 : i32 to index
    %9 = vector.load %arg3[%c0, %8] : memref<8x128xf32, #tpu.memory_space<vmem>>, vector<8x128xf32>
    %c0_3 = arith.constant 0 : index
    %10 = arith.index_cast %7 : i32 to index
    %11 = vector.load %arg4[%c0_3, %10] : memref<1x128xf32, #tpu.memory_space<vmem>>, vector<1x128xf32>
    %12 = vector.broadcast %11 : vector<1x128xf32> to vector<8x128xf32>
    %13 = arith.mulf %9, %12 : vector<8x128xf32>
    %14 = arith.addf %3, %13 : vector<8x128xf32>
    %c1_i32_4 = arith.constant 1 : i32
    %c0_5 = arith.constant 0 : index
    %c0_6 = arith.constant 0 : index
    %15 = vector.load %arg6[%c0_5, %c0_6] : memref<8x128xf32, #tpu.memory_space<vmem>>, vector<8x128xf32>
    %16 = arith.addf %15, %14 : vector<8x128xf32>
    %c0_7 = arith.constant 0 : index
    %c0_8 = arith.constant 0 : index
    %17 = vector.load %arg6[%c0_7, %c0_8] : memref<8x128xf32, #tpu.memory_space<vmem>>, vector<8x128xf32>
    tpu.vector_store %arg6[%c0_7, %c0_8], %16 {strides = array<i32>} : memref<8x128xf32, #tpu.memory_space<vmem>>, vector<8x128xf32>,
    %c0_i32_9 = arith.constant 0 : i32
    %18 = arith.cmpi eq, %arg2, %c0_i32_9 : i32
    %19 = arith.extui %18 : i1 to i32
    %c0_i32_10 = arith.constant 0 : i32
    %20 = arith.cmpi ne, %19, %c0_i32_10 : i32
    scf.if %20 {
      %c0_11 = arith.constant 0 : index
      %c0_12 = arith.constant 0 : index
      %21 = vector.load %arg6[%c0_11, %c0_12] : memref<8x128xf32, #tpu.memory_space<vmem>>, vector<8x128xf32>
      %cst_13 = arith.constant dense<0.000000e+00> : vector<8xf32>
      %22 = vector.multi_reduction <add>, %21, %cst_13 [1] : vector<8x128xf32> to vector<8xf32>
      %23 = vector.shape_cast %22 : vector<8xf32> to vector<8x1xf32>
      %24 = vector.shape_cast %23 : vector<8x1xf32> to vector<1x8x1xf32>
      %c0_14 = arith.constant 0 : index
      %c0_15 = arith.constant 0 : index
      %c0_16 = arith.constant 0 : index
      %25 = vector.load %arg5[%c0_14, %c0_15, %c0_16] : memref<1x8x1xf32, #tpu.memory_space<vmem>>, vector<1x8x1xf32>
      tpu.vector_store %arg5[%c0_14, %c0_15, %c0_16], %24 {strides = array<i32>} : memref<1x8x1xf32, #tpu.memory_space<vmem>>, vector<1x8x1xf32>,
    } else {
    }
    return
  }
  func.func @transform_0(%arg0: i32, %arg1: i32, %arg2: i32) -> (i32, i32) {
    %c1_i32 = arith.constant 1 : i32
    %0 = arith.muli %arg0, %c1_i32 : i32
    %1 = arith.addi %0, %arg2 : i32
    %c0_i32 = arith.constant 0 : i32
    return %arg1, %1 : i32, i32
  }
  func.func @transform_1(%arg0: i32, %arg1: i32, %arg2: i32) -> (i32, i32) {
    %c1_i32 = arith.constant 1 : i32
    %0 = arith.muli %arg0, %c1_i32 : i32
    %1 = arith.addi %0, %arg2 : i32
    %c0_i32 = arith.constant 0 : i32
    %c0_i32_0 = arith.constant 0 : i32
    return %c0_i32, %1 : i32, i32
  }
  func.func @transform_2(%arg0: i32, %arg1: i32, %arg2: i32) -> (i32, i32, i32) {
    %c0_i32 = arith.constant 0 : i32
    %c0_i32_0 = arith.constant 0 : i32
    return %arg0, %arg1, %c0_i32 : i32, i32, i32
  }
}

</mosaic_0001>

<llo_original>
// kernel: tpu_custom_call.1
$region0: #{tpu_custom_call.1}
  #allocation0 [shape = 'u32[]', space=smem, size = 0x4, offset = 0x4, fixed_abs, tag = 'smem constant byte address 0x4 - core index']
  #allocation1 [shape = 'u32[144,128]{1,0:T(1,128)}', space=vmem, size = 0x12000, scoped, tag = 'internal scratch']
  #allocation2 [shape = 'f32[8,128]{1,0:T(8,128)}', space=vmem, size = 0x1000, scoped, tag = 'scratch operand']
  %s0 = inlined_call_operand.hbm [shape: f32[8,256], index: 0, kind: input, shape index: {}]
  %s1 = inlined_call_operand.hbm [shape: f32[1,256], index: 1, kind: input, shape index: {}]
  %s2 = inlined_call_operand.vmem [shape: f32[2,8,1], index: 2, kind: output, shape index: {}]
  %s3 = sld [smem:[#allocation0]]
  $region57: #{tpu_custom_call.1} parent=0
    _
  %s5 = ssub.s32 1, %s3
  %s6 = scalar_select 0, %s5, %s3
  $region1: #{tpu_custom_call.1} parent=0
    #allocation3 [shape = 'u8[8192]{0}', space=vmem, size = 0x2000, scoped, tag = 'input window, operand 0']
    #allocation4 [shape = 's32[2]{0}', space=sflag, size = 0x8, scoped, tag = 'scoped memory for tpu_custom_call.1']
    #allocation5 [shape = 'u8[1024]{0}', space=vmem, size = 0x400, scoped, tag = 'input window, operand 1']
    #allocation6 [shape = 's32[2]{0}', space=sflag, size = 0x8, scoped, tag = 'scoped memory for tpu_custom_call.1']
    %7 = vsyncpa [#allocation4], 0
    %s8 = scalar_lea.sflag [#allocation4], 1
    %9 = vsyncpa %s8, 0
    %10 = vsyncpa [#allocation6], 0
    %s11 = scalar_lea.sflag [#allocation6], 1
    %12 = vsyncpa %s11, 0
    loop: start=0, step=1, limit=4
    $region2: #{tpu_custom_call.1} parent=1 // loop_pre_header
      _
    $region3: #{tpu_custom_call.1} parent=1 // loop_header
      %s14 = sphi 0, %s18
      %p15 = scmp.ge.s32.totalorder %s14, 4
      %s21 = sphi 0, %s40
      %s22 = sphi 0, %s36
      %s23 = sphi 0, %s32
      %s24 = sphi 0, %s21
      %s25 = sphi 0, %s22
      %s26 = sphi 0, %s23
      %s27 = sphi 0, %s24
      %s28 = sphi 0, %s25
      %s29 = sphi 0, %s26
      %s47 = sphi 0, %s49
      %s50 = sphi 0, %s47
      %s51 = sphi 0, %s50
      %s67 = sphi 0, %s51
      %s75 = sphi 0, %s77
      %s78 = sphi 0, %s75
      %s79 = sphi 0, %s78
      %s95 = sphi 0, %s79
      %s103 = sphi 0, %s105
      %s106 = sphi 0, %s103
      %s107 = sphi 0, %s106
      %s123 = sphi 0, %s107
    $region4: #{tpu_custom_call.1} parent=1 // loop_header_branch
      %17 = sbr.rel (%p15) target = $region8
    $region5: #{tpu_custom_call.1} parent=1 // loop_body
      %s19 = ssub.s32 %s14, 1
      %s20 = ssub.s32 %s14, 2
      %s30 = sadd.s32 1, %s23
      %p31 = scmp.ge.s32.totalorder %s30, 1
      %s32 = scalar_select %p31, 0, %s30
      %s33 = sadd.s32 1, %s22
      %s34 = scalar_select %p31, %s33, %s22
      %p35 = scmp.ge.s32.totalorder %s34, 1
      %s36 = scalar_select %p35, 0, %s34
      %s37 = sadd.s32 1, %s21
      %s38 = scalar_select %p35, %s37, %s21
      %p39 = scmp.ge.s32.totalorder %s38, 2
      %s40 = scalar_select %p39, 0, %s38
      %s41 = sadd.s32 %s21, %s23
      %s42 = sadd.s32 %s40, %s32
      %s43 = ssub.s32 %s22, %s36
      %s44 = ssub.s32 %s41, %s42
      %s45 = sor.u32 %s43, %s44
      %p46 = scmp.eq.s32.totalorder %s45, 0
      %s48 = sadd.s32 %s47, 1
      %s49 = scalar_select %p46, %s47, %s48
      %p52 = pneg %p46
      %p53 = scmp.eq.s32.totalorder %s14, 1
      %p54 = por %p52, %p53
      %p55 = scmp.ne.s32.totalorder %s47, %s50
      %p56 = scmp.eq.s32.totalorder %s14, 0
      %p57 = por %p55, %p56
      %p58 = scmp.ne.s32.totalorder %s47, %s50
      %p59 = scmp.eq.s32.totalorder %s19, 1
      %p60 = por %p58, %p59
      %p61 = scmp.ne.s32.totalorder %s50, %s51
      %p62 = scmp.eq.s32.totalorder %s19, 0
      %p63 = por %p61, %p62
      %p64 = scmp.ne.s32.totalorder %s50, %s51
      %p65 = scmp.eq.s32.totalorder %s20, 1
      %p66 = por %p64, %p65
      %p68 = scmp.ne.s32.totalorder %s51, %s67
      %p69 = scmp.eq.s32.totalorder %s20, 0
      %p70 = por %p68, %p69
      %s71 = sadd.s32 %s21, %s23
      %s72 = sadd.s32 %s40, %s32
      %s73 = ssub.s32 %s71, %s72
      %p74 = scmp.eq.s32.totalorder %s73, 0
      %s76 = sadd.s32 %s75, 1
      %s77 = scalar_select %p74, %s75, %s76
      %p80 = pneg %p74
      %p81 = scmp.eq.s32.totalorder %s14, 1
      %p82 = por %p80, %p81
      %p83 = scmp.ne.s32.totalorder %s75, %s78
      %p84 = scmp.eq.s32.totalorder %s14, 0
      %p85 = por %p83, %p84
      %p86 = scmp.ne.s32.totalorder %s75, %s78
      %p87 = scmp.eq.s32.totalorder %s19, 1
      %p88 = por %p86, %p87
      %p89 = scmp.ne.s32.totalorder %s78, %s79
      %p90 = scmp.eq.s32.totalorder %s19, 0
      %p91 = por %p89, %p90
      %p92 = scmp.ne.s32.totalorder %s78, %s79
      %p93 = scmp.eq.s32.totalorder %s20, 1
      %p94 = por %p92, %p93
      %p96 = scmp.ne.s32.totalorder %s79, %s95
      %p97 = scmp.eq.s32.totalorder %s20, 0
      %p98 = por %p96, %p97
      %s99 = ssub.s32 %s21, %s40
      %s100 = ssub.s32 %s22, %s36
      %s101 = sor.u32 %s99, %s100
      %p102 = scmp.eq.s32.totalorder %s101, 0
      %s104 = sadd.s32 %s103, 1
      %s105 = scalar_select %p102, %s103, %s104
      %p108 = pneg %p102
      %p109 = scmp.eq.s32.totalorder %s14, 1
      %p110 = por %p108, %p109
      %p111 = scmp.ne.s32.totalorder %s103, %s106
      %p112 = scmp.eq.s32.totalorder %s14, 0
      %p113 = por %p111, %p112
      %p114 = scmp.ne.s32.totalorder %s103, %s106
      %p115 = scmp.eq.s32.totalorder %s19, 1
      %p116 = por %p114, %p115
      %p117 = scmp.ne.s32.totalorder %s106, %s107
      %p118 = scmp.eq.s32.totalorder %s19, 0
      %p119 = por %p117, %p118
      %p120 = scmp.ne.s32.totalorder %s106, %s107
      %p121 = scmp.eq.s32.totalorder %s20, 1
      %p122 = por %p120, %p121
      %p124 = scmp.ne.s32.totalorder %s107, %s123
      %p125 = scmp.eq.s32.totalorder %s20, 0
      %p126 = por %p124, %p125
      %p127 = scmp.le.s32.totalorder 1, %s14
      %p128 = scmp.lt.s32.totalorder %s14, 3
      %p129 = pnand %p127, %p128
      %p130 = pneg %p129
      // Predicated region
      $region9: #{tpu_custom_call.1} parent=5 // pred_check
        _
      $region10: #{tpu_custom_call.1} parent=5 // pred_check_branch
        %132 = sbr.rel (%p129) target = $region12
      $region11: #{tpu_custom_call.1} parent=5 // pred_region
        %s133 = ssub.s32 %s14, 1
      $region12: #{tpu_custom_call.1} parent=5 // pred_fallthru
        _
      %p134 = scmp.lt.s32.totalorder %s14, 2
      // Predicated region
      $region13: #{tpu_custom_call.1} parent=5 // pred_check
        %p135 = pneg %p134
      $region14: #{tpu_custom_call.1} parent=5 // pred_check_branch
        %137 = sbr.rel (%p135) target = $region16
      $region15: #{tpu_custom_call.1} parent=5 // pred_region
        // Predicated region
        $region17: #{tpu_custom_call.1} parent=15 // pred_check
          %p138 = pneg %p57
        $region18: #{tpu_custom_call.1} parent=15 // pred_check_branch
          %140 = sbr.rel (%p138) target = $region20
        $region19: #{tpu_custom_call.1} parent=15 // pred_region
          %s141 = sand.u32 %s47, 1
          %s142 = scalar_lea.sflag [#allocation4], %s141
          %s143 = sand.u32 %s47, 1
          %s144 = smul.addr %s143, 8
          %s145 = scalar_lea.vmem [#allocation3], %s144
          %s146 = sadd.s32 %s21, %s23
          %s148 = ssub.s32 128, 128
          %149 = vsyncadd %s142, %s148
          %s150 = smul.addr %s22, 2
          %s151 = sadd.s32 %s146, %s150
          %s152 = smul.addr %s151, 128
          %s153 = scalar_lea.hbm %s0, %s152
          %s155 = sshll.u32 %s145, 4
          %s156 = int_to_ptr.vmem [resolvable:$true] %s155
          %158 = dma.hbm_to_vmem [thread:$0]  %s153, 128, %s156, %s142
        $region20: #{tpu_custom_call.1} parent=15 // pred_fallthru
          _
        // Predicated region
        $region21: #{tpu_custom_call.1} parent=15 // pred_check
          %p159 = pneg %p85
        $region22: #{tpu_custom_call.1} parent=15 // pred_check_branch
          %161 = sbr.rel (%p159) target = $region24
        $region23: #{tpu_custom_call.1} parent=15 // pred_region
          %s162 = sand.u32 %s75, 1
          %s163 = scalar_lea.sflag [#allocation6], %s162
          %s164 = sand.u32 %s75, 1
          %s165 = scalar_lea.vmem [#allocation5], %s164
          %s166 = sadd.s32 %s21, %s23
          %s168 = ssub.s32 16, 16
          %169 = vsyncadd %s163, %s168
          %s170 = smul.addr %s166, 16
          %s171 = scalar_lea.hbm %s1, %s170
          %s173 = sshll.u32 %s165, 4
          %s174 = int_to_ptr.vmem [resolvable:$true] %s173
          %176 = dma.hbm_to_vmem [thread:$0]  %s171, 16, %s174, %s163
        $region24: #{tpu_custom_call.1} parent=15 // pred_fallthru
          _
      $region16: #{tpu_custom_call.1} parent=5 // pred_fallthru
        _
      %p177 = scmp.le.s32.totalorder 1, %s14
      %p178 = scmp.lt.s32.totalorder %s14, 3
      %p179 = pnand %p177, %p178
      %p180 = pneg %p179
      // Predicated region
      $region25: #{tpu_custom_call.1} parent=5 // pred_check
        _
      $region26: #{tpu_custom_call.1} parent=5 // pred_check_branch
        %182 = sbr.rel (%p179) target = $region28
      $region27: #{tpu_custom_call.1} parent=5 // pred_region
        %s183 = ssub.s32 %s14, 1
        %s184 = sand.u32 %s50, 1
        %s185 = scalar_lea.sflag [#allocation4], %s184
        %s186 = sand.u32 %s50, 1
        %s187 = smul.addr %s186, 8
        %s188 = scalar_lea.vmem [#allocation3], %s187
        // Predicated region
        $region29: #{tpu_custom_call.1} parent=27 // pred_check
          %p189 = pneg %p63
        $region30: #{tpu_custom_call.1} parent=27 // pred_check_branch
          %191 = sbr.rel (%p189) target = $region32
        $region31: #{tpu_custom_call.1} parent=27 // pred_region
          %192 = dma.done %s185, 128
        $region32: #{tpu_custom_call.1} parent=27 // pred_fallthru
          _
        %s193 = sand.u32 %s78, 1
        %s194 = scalar_lea.sflag [#allocation6], %s193
        %s195 = sand.u32 %s78, 1
        %s196 = scalar_lea.vmem [#allocation5], %s195
        // Predicated region
        $region33: #{tpu_custom_call.1} parent=27 // pred_check
          %p197 = pneg %p91
        $region34: #{tpu_custom_call.1} parent=27 // pred_check_branch
          %199 = sbr.rel (%p197) target = $region36
        $region35: #{tpu_custom_call.1} parent=27 // pred_region
          %200 = dma.done %s194, 16
        $region36: #{tpu_custom_call.1} parent=27 // pred_fallthru
          _
        %s201 = sand.u32 %s50, 1
        %s202 = scalar_lea.sflag [#allocation4], %s201
        %s203 = sand.u32 %s50, 1
        %s204 = smul.addr %s203, 8
        %s205 = scalar_lea.vmem [#allocation3], %s204
        %p206 = pneg %p63
        %p207 = pneg %p60
        %s208 = sand.u32 %s78, 1
        %s209 = scalar_lea.sflag [#allocation6], %s208
        %s210 = sand.u32 %s78, 1
        %s211 = scalar_lea.vmem [#allocation5], %s210
        %p212 = pneg %p91
        %p213 = pneg %p88
        %p214 = pneg %p119
        %p215 = pneg %p116
        %p216 = scmp.lt.s32.totalorder %s24, 1
        %s217 = scalar_select %p216, %s24, 1
        %p218 = scmp.lt.s32.totalorder %s25, 0
        %s219 = scalar_select %p218, %s25, 0
        %s220 = sadd.s32 %s219, %s217
        %s221 = smul.addr %s220, 8
        %s222 = scalar_lea.vmem %s2, %s221
        %s223 = sadd.s32 %s24, %s26
        %s224 = sadd.s32 %s24, %s26
        %p225 = scmp.lt.s32.totalorder %s24, 1
        %s226 = scalar_select %p225, %s24, 1
        %p227 = scmp.lt.s32.totalorder %s25, 0
        %s228 = scalar_select %p227, %s25, 0
        %s229 = sadd.s32 %s228, %s226
        %s230 = smul.addr %s229, 8
        %s231 = scalar_lea.vmem %s2, %s230
        %p232 = scmp.eq.s32.totalorder %s26, 0
        // Predicated region
        $region37: #{tpu_custom_call.1} parent=27 // pred_check
          %p233 = pneg %p232
        $region38: #{tpu_custom_call.1} parent=27 // pred_check_branch
          %235 = sbr.rel (%p233) target = $region40
        $region39: #{tpu_custom_call.1} parent=27 // pred_region
          %236 = vst [vmem:[#allocation2] sm:$0xff] 0.0
        $region40: #{tpu_custom_call.1} parent=27 // pred_fallthru
          _
        %v237 = vld [vmem:[%s188] sm:$0xff]
        %v238 = vld [vmem:[%s196] sm:$0x1]
        %v240 = vlaneseq
        %v241 = vshrl.u32 %v240, 7
        %v242 = vsub.s32 0, %v241
        %v243 = vrot.slane %v238, %v242
        %v245 = vmul.f32 %v237, %v243
        %v246 = vadd.f32 %v245, 0.0
        %v247 = vld [vmem:[#allocation2] sm:$0xff]
        %v248 = vadd.f32 %v247, %v246
        %249 = vst [vmem:[#allocation2] sm:$0xff] %v248
        // Predicated region
        $region41: #{tpu_custom_call.1} parent=27 // pred_check
          %p250 = pneg %p232
        $region42: #{tpu_custom_call.1} parent=27 // pred_check_branch
          %252 = sbr.rel (%p250) target = $region44
        $region43: #{tpu_custom_call.1} parent=27 // pred_region
          %v253 = vld [vmem:[#allocation2] sm:$0xff]
          %254 = vadd.xlane.f32.xlu0 %v253
          %v255 = vpop.xlane.xlu0 %254
          %vm256 = vcmask 7168
          %257 = vst.msk [vmem:[%s231] sm:$0xff] %vm256, %v255
        $region44: #{tpu_custom_call.1} parent=27 // pred_fallthru
          _
        %p258 = scmp.lt.s32.totalorder %s24, 1
        %s259 = scalar_select %p258, %s24, 1
        %p260 = scmp.lt.s32.totalorder %s25, 0
        %s261 = scalar_select %p260, %s25, 0
        %s262 = sadd.s32 %s261, %s259
        %s263 = smul.addr %s262, 8
        %s264 = scalar_lea.vmem %s2, %s263
        // Predicated region
        $region45: #{tpu_custom_call.1} parent=27 // pred_check
          %p265 = pneg %p116
        $region46: #{tpu_custom_call.1} parent=27 // pred_check_branch
          %267 = sbr.rel (%p265) target = $region48
        $region47: #{tpu_custom_call.1} parent=27 // pred_region
          _
        $region48: #{tpu_custom_call.1} parent=27 // pred_fallthru
          _
      $region28: #{tpu_custom_call.1} parent=5 // pred_fallthru
        _
      %p268 = scmp.le.s32.totalorder 2, %s14
      // Predicated region
      $region49: #{tpu_custom_call.1} parent=5 // pred_check
        %p269 = pneg %p268
      $region50: #{tpu_custom_call.1} parent=5 // pred_check_branch
        %271 = sbr.rel (%p269) target = $region52
      $region51: #{tpu_custom_call.1} parent=5 // pred_region
        %s272 = ssub.s32 %s14, 2
        // Predicated region
        $region53: #{tpu_custom_call.1} parent=51 // pred_check
          %p273 = pneg %p122
        $region54: #{tpu_custom_call.1} parent=51 // pred_check_branch
          %275 = sbr.rel (%p273) target = $region56
        $region55: #{tpu_custom_call.1} parent=51 // pred_region
          %p276 = scmp.lt.s32.totalorder %s27, 1
          %s277 = scalar_select %p276, %s27, 1
          %p278 = scmp.lt.s32.totalorder %s28, 0
          %s279 = scalar_select %p278, %s28, 0
          %s280 = sadd.s32 %s279, %s277
          %s281 = smul.addr %s280, 8
          %s282 = scalar_lea.vmem %s2, %s281
        $region56: #{tpu_custom_call.1} parent=51 // pred_fallthru
          _
      $region52: #{tpu_custom_call.1} parent=5 // pred_fallthru
        _
    $region6: #{tpu_custom_call.1} parent=1 // loop_footer
      %s18 = sadd.s32 1, %s14
    $region7: #{tpu_custom_call.1} parent=1 // loop_footer_branch
      %13 = sbr.rel target = $region3
    $region8: #{tpu_custom_call.1} parent=1 // loop_exit
      _
    %283 = vsyncpa [#allocation4], 1
    %s284 = scalar_lea.sflag [#allocation4], 1
    %285 = vsyncpa %s284, 1
    %286 = vsyncpa [#allocation6], 1
    %s287 = scalar_lea.sflag [#allocation6], 1
    %288 = vsyncpa %s287, 1

</llo_original>
